<compile_context>
chip_gen: v7x
topology: tpu7x:2x2x1
jax: 0.10.0
libtpu: 0.0.40
codegen_flags: <defaults>
</compile_context>

<pallas_src>
import functools

import jax
import jax.numpy as jnp
from jax.experimental import pallas as pl
from jax.experimental.pallas import tpu as pltpu


def _round_up(x, m):
    return (x + m - 1) // m * m


def _gelu_tanh(x):
    # TODO(synk): PyTorch F.gelu defaults to the exact erf formulation; the tanh
    # approximation ("gelu_new", standard in BERT impls, max dev ~1e-3) is used here
    # because erf lowering is not guaranteed in Mosaic.
    c = 0.7978845608028654  # sqrt(2/pi)
    return 0.5 * x * (1.0 + jnp.tanh(c * (x + 0.044715 * x * x * x)))


def mlm_kernel(x_ref, wd_ref, bd_ref, gamma_ref, beta_ref, wdec_ref, bdec_ref,
               o_ref, y_ref, *, eps):
    j = pl.program_id(1)

    # Dense(H,H) + GELU + LayerNorm: compute once per row tile (first vocab block),
    # keep the (TN, H) result resident in VMEM scratch for all vocab blocks.
    @pl.when(j == 0)
    def _():
        h = jnp.dot(x_ref[...], wd_ref[...], preferred_element_type=jnp.float32)
        h = h + bd_ref[...]                      # (1, H) broadcast, f32
        h = _gelu_tanh(h)
        mu = jnp.mean(h, axis=-1, keepdims=True)
        cen = h - mu
        var = jnp.mean(cen * cen, axis=-1, keepdims=True)
        y = cen * jax.lax.rsqrt(var + eps)
        y_ref[...] = y * gamma_ref[...] + beta_ref[...]

    # Decoder tile: (TN, H) @ (H, TV) on the MXU, f32 accumulation, + bias.
    logits = jnp.dot(y_ref[...].astype(wdec_ref.dtype), wdec_ref[...],
                     preferred_element_type=jnp.float32)
    o_ref[...] = (logits + bdec_ref[...]).astype(o_ref.dtype)


def bert_mlm_forward(inputs, w_dense, b_dense, gamma, beta, w_dec, b_dec,
                     *, eps=1e-12, tn=256, tv=256):
    """inputs: (..., H); w_dense: (H, H); b_dense/gamma/beta: (H,);
       w_dec: (V, H) (PyTorch nn.Linear layout); b_dec: (V,). Returns (..., V)."""
    orig_shape = inputs.shape
    H = orig_shape[-1]
    V = w_dec.shape[0]
    x = inputs.reshape(-1, H)
    N = x.shape[0]
    dtype = x.dtype

    # Tile sizes respecting the (8, 128) tiling rule; pad rows / vocab as needed.
    tn = min(tn, _round_up(N, 8))
    n_pad = _round_up(N, tn)
    tv = min(tv, _round_up(V, 128))
    v_pad = _round_up(V, tv)

    if n_pad != N:
        x = jnp.pad(x, ((0, n_pad - N), (0, 0)))

    wd_t = w_dense.T.astype(dtype)                       # (H, H), matmul in input dtype
    bd = b_dense.reshape(1, H).astype(jnp.float32)
    g = gamma.reshape(1, H).astype(jnp.float32)
    b = beta.reshape(1, H).astype(jnp.float32)
    wdec_t = w_dec.T.astype(dtype)                       # (H, V)
    bdec = b_dec.reshape(1, V).astype(jnp.float32)
    if v_pad != V:
        wdec_t = jnp.pad(wdec_t, ((0, 0), (0, v_pad - V)))
        bdec = jnp.pad(bdec, ((0, 0), (0, v_pad - V)))

    grid = (n_pad // tn, v_pad // tv)

    out = pl.pallas_call(
        functools.partial(mlm_kernel, eps=eps),
        out_shape=jax.ShapeDtypeStruct((n_pad, v_pad), dtype),
        grid_spec=pltpu.PrefetchScalarGridSpec(
            num_scalar_prefetch=0,
            grid=grid,
            in_specs=[
                pl.BlockSpec((tn, H), lambda i, j: (i, 0)),   # activations (row tile)
                pl.BlockSpec((H, H), lambda i, j: (0, 0)),    # dense weight (resident)
                pl.BlockSpec((1, H), lambda i, j: (0, 0)),    # dense bias
                pl.BlockSpec((1, H), lambda i, j: (0, 0)),    # LN gamma
                pl.BlockSpec((1, H), lambda i, j: (0, 0)),    # LN beta
                pl.BlockSpec((H, tv), lambda i, j: (0, j)),   # decoder weight (vocab tile)
                pl.BlockSpec((1, tv), lambda i, j: (0, j)),   # decoder bias (vocab tile)
            ],
            out_specs=pl.BlockSpec((tn, tv), lambda i, j: (i, j)),
            scratch_shapes=[pltpu.VMEM((tn, H), jnp.float32)],  # LN'd intermediate
        ),
        compiler_params=pltpu.CompilerParams(
            dimension_semantics=("parallel", "arbitrary"),
            vmem_limit_bytes=32 * 1024 * 1024,   # explicit, safe on v7x's 64 MiB VMEM
        ),
    )(x, wd_t, bd, g, b, wdec_t, bdec)

    out = out[:N, :V]
    return out.reshape(*orig_shape[:-1], V)


if __name__ == "__main__":
    # Small shapes consistent with the module: batch=2, seq=8, hidden=32, vocab=512.
    B, S, H, V = 2, 8, 32, 512
    key = jax.random.PRNGKey(0)
    ks = jax.random.split(key, 6)

    x = jax.random.normal(ks[0], (B, S, H), dtype=jnp.float32)
    w_dense = jax.random.normal(ks[1], (H, H), dtype=jnp.float32) / jnp.sqrt(H)
    b_dense = 0.02 * jax.random.normal(ks[2], (H,), dtype=jnp.float32)
    gamma = 1.0 + 0.1 * jax.random.normal(ks[3], (H,), dtype=jnp.float32)
    beta = 0.1 * jax.random.normal(ks[4], (H,), dtype=jnp.float32)
    w_dec = jax.random.normal(ks[5], (V, H), dtype=jnp.float32) / jnp.sqrt(H)
    b_dec = jnp.zeros((V,), dtype=jnp.float32)   # module initializes decoder bias to zeros

    fwd = jax.jit(functools.partial(bert_mlm_forward, tv=128))  # tv=128 -> exercises vocab grid
    out = fwd(x, w_dense, b_dense, gamma, beta, w_dec, b_dec)
    jax.block_until_ready(out)

    # Pure-JAX reference (same tanh-GELU as the kernel).
    def ref_fn(xx):
        h = xx @ w_dense.T + b_dense
        h = _gelu_tanh(h)
        mu = h.mean(-1, keepdims=True)
        var = ((h - mu) ** 2).mean(-1, keepdims=True)
        h = (h - mu) / jnp.sqrt(var + 1e-12) * gamma + beta
        return h @ w_dec.T + b_dec

    ref = ref_fn(x)
    assert out.shape == (B, S, V)
    assert jnp.allclose(out, ref, atol=2e-2, rtol=2e-2), "mismatch vs reference"

    print("KERNEL_OK")
</pallas_src>

<mosaic_0001>
module attributes {stable_mosaic.version = 11 : i64} {
  func.func @mlm_kernel(%arg0: i32, %arg1: i32, %arg2: memref<16x32xf32, #tpu.memory_space<vmem>>, %arg3: memref<32x32xf32, #tpu.memory_space<vmem>>, %arg4: memref<1x32xf32, #tpu.memory_space<vmem>>, %arg5: memref<1x32xf32, #tpu.memory_space<vmem>>, %arg6: memref<1x32xf32, #tpu.memory_space<vmem>>, %arg7: memref<32x128xf32, #tpu.memory_space<vmem>>, %arg8: memref<1x128xf32, #tpu.memory_space<vmem>>, %arg9: memref<16x128xf32, #tpu.memory_space<vmem>>, %arg10: memref<16x32xf32, #tpu.memory_space<vmem>>) attributes {dimension_semantics = [#tpu.dimension_semantics<parallel>, #tpu.dimension_semantics<arbitrary>], iteration_bounds = array<i64: 1, 4>, scalar_prefetch = 0 : i64, scratch_operands = 1 : i64, tpu.core_type = #tpu.core_type<tc>, window_params = [{transform_indices = @transform_0, window_bounds = array<i64: 16, 32>}, {pipeline_mode = #tpu.pipeline_mode<synchronous>, transform_indices = @transform_1, window_bounds = array<i64: 32, 32>}, {pipeline_mode = #tpu.pipeline_mode<synchronous>, transform_indices = @transform_2, window_bounds = array<i64: 1, 32>}, {pipeline_mode = #tpu.pipeline_mode<synchronous>, transform_indices = @transform_3, window_bounds = array<i64: 1, 32>}, {pipeline_mode = #tpu.pipeline_mode<synchronous>, transform_indices = @transform_4, window_bounds = array<i64: 1, 32>}, {transform_indices = @transform_5, window_bounds = array<i64: 32, 128>}, {transform_indices = @transform_6, window_bounds = array<i64: 1, 128>}, {transform_indices = @transform_7, window_bounds = array<i64: 16, 128>}]} {
    %c0_i32 = arith.constant 0 : i32
    %0 = arith.cmpi eq, %arg1, %c0_i32 : i32
    %1 = arith.extui %0 : i1 to i32
    %c0_i32_0 = arith.constant 0 : i32
    %2 = arith.cmpi ne, %1, %c0_i32_0 : i32
    scf.if %2 {
      %c0_8 = arith.constant 0 : index
      %c0_9 = arith.constant 0 : index
      %10 = vector.load %arg2[%c0_8, %c0_9] : memref<16x32xf32, #tpu.memory_space<vmem>>, vector<16x32xf32>
      %c0_10 = arith.constant 0 : index
      %c0_11 = arith.constant 0 : index
      %11 = vector.load %arg3[%c0_10, %c0_11] : memref<32x32xf32, #tpu.memory_space<vmem>>, vector<32x32xf32>
      %cst_12 = arith.constant dense<0.000000e+00> : vector<16x32xf32>
      %12 = tpu.matmul %10, %11, %cst_12 {dimension_numbers = #tpu.dot_dimension_numbers<[1], [0], [0], [1], [0, 0, 1, 1], [], []>} : vector<16x32xf32>, vector<32x32xf32>, vector<16x32xf32> -> vector<16x32xf32>
      %c0_13 = arith.constant 0 : index
      %c0_14 = arith.constant 0 : index
      %13 = vector.load %arg4[%c0_13, %c0_14] : memref<1x32xf32, #tpu.memory_space<vmem>>, vector<1x32xf32>
      %14 = vector.broadcast %13 : vector<1x32xf32> to vector<16x32xf32>
      %15 = arith.addf %12, %14 : vector<16x32xf32>
      %cst_15 = arith.constant 5.000000e-01 : f32
      %16 = vector.broadcast %cst_15 : f32 to vector<16x32xf32>
      %17 = arith.mulf %16, %15 : vector<16x32xf32>
      %cst_16 = arith.constant 4.471500e-02 : f32
      %18 = vector.broadcast %cst_16 : f32 to vector<16x32xf32>
      %19 = arith.mulf %18, %15 : vector<16x32xf32>
      %20 = arith.mulf %19, %15 : vector<16x32xf32>
      %21 = arith.mulf %20, %15 : vector<16x32xf32>
      %22 = arith.addf %15, %21 : vector<16x32xf32>
      %cst_17 = arith.constant 0.797884583 : f32
      %23 = vector.broadcast %cst_17 : f32 to vector<16x32xf32>
      %24 = arith.mulf %23, %22 : vector<16x32xf32>
      %25 = math.tanh %24 : vector<16x32xf32>
      %cst_18 = arith.constant 1.000000e+00 : f32
      %26 = vector.broadcast %cst_18 : f32 to vector<16x32xf32>
      %27 = arith.addf %26, %25 : vector<16x32xf32>
      %28 = arith.mulf %17, %27 : vector<16x32xf32>
      %cst_19 = arith.constant dense<0.000000e+00> : vector<16xf32>
      %29 = vector.multi_reduction <add>, %28, %cst_19 [1] : vector<16x32xf32> to vector<16xf32>
      %30 = vector.shape_cast %29 : vector<16xf32> to vector<16x1xf32>
      %cst_20 = arith.constant 3.200000e+01 : f32
      %31 = vector.broadcast %cst_20 : f32 to vector<16x1xf32>
      %32 = arith.divf %30, %31 : vector<16x1xf32>
      %33 = vector.broadcast %32 : vector<16x1xf32> to vector<16x32xf32>
      %34 = arith.subf %28, %33 : vector<16x32xf32>
      %35 = arith.mulf %34, %34 : vector<16x32xf32>
      %cst_21 = arith.constant dense<0.000000e+00> : vector<16xf32>
      %36 = vector.multi_reduction <add>, %35, %cst_21 [1] : vector<16x32xf32> to vector<16xf32>
      %37 = vector.shape_cast %36 : vector<16xf32> to vector<16x1xf32>
      %cst_22 = arith.constant 3.200000e+01 : f32
      %38 = vector.broadcast %cst_22 : f32 to vector<16x1xf32>
      %39 = arith.divf %37, %38 : vector<16x1xf32>
      %cst_23 = arith.constant 9.99999996E-13 : f32
      %40 = vector.broadcast %cst_23 : f32 to vector<16x1xf32>
      %41 = arith.addf %39, %40 : vector<16x1xf32>
      %42 = math.rsqrt %41 : vector<16x1xf32>
      %43 = vector.broadcast %42 : vector<16x1xf32> to vector<16x32xf32>
      %44 = arith.mulf %34, %43 : vector<16x32xf32>
      %c0_24 = arith.constant 0 : index
      %c0_25 = arith.constant 0 : index
      %45 = vector.load %arg5[%c0_24, %c0_25] : memref<1x32xf32, #tpu.memory_space<vmem>>, vector<1x32xf32>
      %46 = vector.broadcast %45 : vector<1x32xf32> to vector<16x32xf32>
      %47 = arith.mulf %44, %46 : vector<16x32xf32>
      %c0_26 = arith.constant 0 : index
      %c0_27 = arith.constant 0 : index
      %48 = vector.load %arg6[%c0_26, %c0_27] : memref<1x32xf32, #tpu.memory_space<vmem>>, vector<1x32xf32>
      %49 = vector.broadcast %48 : vector<1x32xf32> to vector<16x32xf32>
      %50 = arith.addf %47, %49 : vector<16x32xf32>
      %c0_28 = arith.constant 0 : index
      %c0_29 = arith.constant 0 : index
      %51 = vector.load %arg10[%c0_28, %c0_29] : memref<16x32xf32, #tpu.memory_space<vmem>>, vector<16x32xf32>
      tpu.vector_store %arg10[%c0_28, %c0_29], %50 {strides = array<i32>} : memref<16x32xf32, #tpu.memory_space<vmem>>, vector<16x32xf32>,
    } else {
    }
    %c0 = arith.constant 0 : index
    %c0_1 = arith.constant 0 : index
    %3 = vector.load %arg10[%c0, %c0_1] : memref<16x32xf32, #tpu.memory_space<vmem>>, vector<16x32xf32>
    %c0_2 = arith.constant 0 : index
    %c0_3 = arith.constant 0 : index
    %4 = vector.load %arg7[%c0_2, %c0_3] : memref<32x128xf32, #tpu.memory_space<vmem>>, vector<32x128xf32>
    %cst = arith.constant dense<0.000000e+00> : vector<16x128xf32>
    %5 = tpu.matmul %3, %4, %cst {dimension_numbers = #tpu.dot_dimension_numbers<[1], [0], [0], [1], [0, 0, 1, 1], [], []>} : vector<16x32xf32>, vector<32x128xf32>, vector<16x128xf32> -> vector<16x128xf32>
    %c0_4 = arith.constant 0 : index
    %c0_5 = arith.constant 0 : index
    %6 = vector.load %arg8[%c0_4, %c0_5] : memref<1x128xf32, #tpu.memory_space<vmem>>, vector<1x128xf32>
    %7 = vector.broadcast %6 : vector<1x128xf32> to vector<16x128xf32>
    %8 = arith.addf %5, %7 : vector<16x128xf32>
    %c0_6 = arith.constant 0 : index
    %c0_7 = arith.constant 0 : index
    %9 = vector.load %arg9[%c0_6, %c0_7] : memref<16x128xf32, #tpu.memory_space<vmem>>, vector<16x128xf32>
    tpu.vector_store %arg9[%c0_6, %c0_7], %8 {strides = array<i32>} : memref<16x128xf32, #tpu.memory_space<vmem>>, vector<16x128xf32>,
    return
  }
  func.func @transform_0(%arg0: i32, %arg1: i32) -> (i32, i32) {
    %c0_i32 = arith.constant 0 : i32
    %c0_i32_0 = arith.constant 0 : i32
    return %arg0, %c0_i32 : i32, i32
  }
  func.func @transform_1(%arg0: i32, %arg1: i32) -> (i32, i32) {
    %c0_i32 = arith.constant 0 : i32
    %c0_i32_0 = arith.constant 0 : i32
    %c0_i32_1 = arith.constant 0 : i32
    return %c0_i32, %c0_i32_0 : i32, i32
  }
  func.func @transform_2(%arg0: i32, %arg1: i32) -> (i32, i32) {
    %c0_i32 = arith.constant 0 : i32
    %c0_i32_0 = arith.constant 0 : i32
    %c0_i32_1 = arith.constant 0 : i32
    return %c0_i32, %c0_i32_0 : i32, i32
  }
  func.func @transform_3(%arg0: i32, %arg1: i32) -> (i32, i32) {
    %c0_i32 = arith.constant 0 : i32
    %c0_i32_0 = arith.constant 0 : i32
    %c0_i32_1 = arith.constant 0 : i32
    return %c0_i32, %c0_i32_0 : i32, i32
  }
  func.func @transform_4(%arg0: i32, %arg1: i32) -> (i32, i32) {
    %c0_i32 = arith.constant 0 : i32
    %c0_i32_0 = arith.constant 0 : i32
    %c0_i32_1 = arith.constant 0 : i32
    return %c0_i32, %c0_i32_0 : i32, i32
  }
  func.func @transform_5(%arg0: i32, %arg1: i32) -> (i32, i32) {
    %c0_i32 = arith.constant 0 : i32
    %c0_i32_0 = arith.constant 0 : i32
    return %c0_i32, %arg1 : i32, i32
  }
  func.func @transform_6(%arg0: i32, %arg1: i32) -> (i32, i32) {
    %c0_i32 = arith.constant 0 : i32
    %c0_i32_0 = arith.constant 0 : i32
    return %c0_i32, %arg1 : i32, i32
  }
  func.func @transform_7(%arg0: i32, %arg1: i32) -> (i32, i32) {
    %c0_i32 = arith.constant 0 : i32
    return %arg0, %arg1 : i32, i32
  }
}

</mosaic_0001>

<llo_original>
// kernel: bert_mlm_forward.1
$region0: #{bert_mlm_forward.1}
  #allocation0 [shape = 'u32[]', space=smem, size = 0x4, offset = 0x4, fixed_abs, tag = 'smem constant byte address 0x4 - core index']
  #allocation1 [shape = 'u32[144,128]{1,0:T(1,128)}', space=vmem, size = 0x12000, scoped, tag = 'internal scratch']
  #allocation2 [shape = 'f32[16,32]{1,0:T(8,128)}', space=vmem, size = 0x2000, scoped, tag = 'scratch operand']
  %s0 = inlined_call_operand.vmem [shape: f32[16,32], index: 0, kind: input, shape index: {}]
  %s1 = inlined_call_operand.vmem [shape: f32[32,32], index: 1, kind: input, shape index: {}]
  %s2 = inlined_call_operand.vmem [shape: f32[1,32], index: 2, kind: input, shape index: {}]
  %s3 = inlined_call_operand.vmem [shape: f32[1,32], index: 3, kind: input, shape index: {}]
  %s4 = inlined_call_operand.vmem [shape: f32[1,32], index: 4, kind: input, shape index: {}]
  %s5 = inlined_call_operand.hbm [shape: f32[32,512], index: 5, kind: input, shape index: {}]
  %s6 = inlined_call_operand.vmem [shape: f32[1,512], index: 6, kind: input, shape index: {}]
  %s7 = inlined_call_operand.hbm [shape: f32[16,512], index: 7, kind: output, shape index: {}]
  %s8 = sld [smem:[#allocation0]]
  $region69: #{bert_mlm_forward.1} parent=0
    _
  %s10 = ssub.s32 1, %s8
  %s11 = scalar_select 0, %s10, %s8
  $region1: #{bert_mlm_forward.1} parent=0
    #allocation3 [shape = 'u8[32768]{0}', space=vmem, size = 0x8000, scoped, tag = 'input window, operand 5']
    #allocation4 [shape = 's32[2]{0}', space=sflag, size = 0x8, scoped, tag = 'scoped memory for bert_mlm_forward.1']
    #allocation5 [shape = 's32[2]{0}', space=sflag, size = 0x8, scoped, tag = 'scoped memory for bert_mlm_forward.1']
    #allocation6 [shape = 'u8[16384]{0}', space=vmem, size = 0x4000, scoped, tag = 'output window, operand 0']
    %12 = vsyncpa [#allocation4], 0
    %s13 = scalar_lea.sflag [#allocation4], 1
    %14 = vsyncpa %s13, 0
    %15 = vsyncpa [#allocation5], 0
    %s16 = scalar_lea.sflag [#allocation5], 1
    %17 = vsyncpa %s16, 0
    loop: start=0, step=1, limit=6
    $region2: #{bert_mlm_forward.1} parent=1 // loop_pre_header
      _
    $region3: #{bert_mlm_forward.1} parent=1 // loop_header
      %s19 = sphi 0, %s23
      %p20 = scmp.ge.s32.totalorder %s19, 6
      %s26 = sphi 0, %s38
      %s27 = sphi 0, %s34
      %s28 = sphi 0, %s26
      %s29 = sphi 0, %s27
      %s30 = sphi 0, %s28
      %s31 = sphi 0, %s29
      %s41 = sphi 0, %s43
      %s44 = sphi 0, %s41
      %s45 = sphi 0, %s44
      %s61 = sphi 0, %s45
      %s65 = sphi 0, %s65
      %s67 = sphi 0, %s65
      %s68 = sphi 0, %s67
      %s82 = sphi 0, %s68
      %s86 = sphi 0, %s86
      %s88 = sphi 0, %s86
      %s89 = sphi 0, %s88
      %s103 = sphi 0, %s89
      %s107 = sphi 0, %s107
      %s109 = sphi 0, %s107
      %s110 = sphi 0, %s109
      %s124 = sphi 0, %s110
      %s128 = sphi 0, %s128
      %s130 = sphi 0, %s128
      %s131 = sphi 0, %s130
      %s145 = sphi 0, %s131
      %s151 = sphi 0, %s153
      %s154 = sphi 0, %s151
      %s155 = sphi 0, %s154
      %s171 = sphi 0, %s155
      %s177 = sphi 0, %s179
      %s180 = sphi 0, %s177
      %s181 = sphi 0, %s180
      %s197 = sphi 0, %s181
      %s205 = sphi 0, %s207
      %s208 = sphi 0, %s205
      %s209 = sphi 0, %s208
      %s225 = sphi 0, %s209
    $region4: #{bert_mlm_forward.1} parent=1 // loop_header_branch
      %22 = sbr.rel (%p20) target = $region8
    $region5: #{bert_mlm_forward.1} parent=1 // loop_body
      %s24 = ssub.s32 %s19, 1
      %s25 = ssub.s32 %s19, 2
      %s32 = sadd.s32 1, %s27
      %p33 = scmp.ge.s32.totalorder %s32, 4
      %s34 = scalar_select %p33, 0, %s32
      %s35 = sadd.s32 1, %s26
      %s36 = scalar_select %p33, %s35, %s26
      %p37 = scmp.ge.s32.totalorder %s36, 1
      %s38 = scalar_select %p37, 0, %s36
      %s39 = ssub.s32 %s26, %s38
      %p40 = scmp.eq.s32.totalorder %s39, 0
      %s42 = sadd.s32 %s41, 1
      %s43 = scalar_select %p40, %s41, %s42
      %p46 = pneg %p40
      %p47 = scmp.eq.s32.totalorder %s19, 3
      %p48 = por %p46, %p47
      %p49 = scmp.ne.s32.totalorder %s41, %s44
      %p50 = scmp.eq.s32.totalorder %s19, 0
      %p51 = por %p49, %p50
      %p52 = scmp.ne.s32.totalorder %s41, %s44
      %p53 = scmp.eq.s32.totalorder %s24, 3
      %p54 = por %p52, %p53
      %p55 = scmp.ne.s32.totalorder %s44, %s45
      %p56 = scmp.eq.s32.totalorder %s24, 0
      %p57 = por %p55, %p56
      %p58 = scmp.ne.s32.totalorder %s44, %s45
      %p59 = scmp.eq.s32.totalorder %s25, 3
      %p60 = por %p58, %p59
      %p62 = scmp.ne.s32.totalorder %s45, %s61
      %p63 = scmp.eq.s32.totalorder %s25, 0
      %p64 = por %p62, %p63
      %s66 = sadd.s32 %s65, 1
      %p69 = scmp.eq.s32.totalorder %s19, 3
      %p70 = scmp.ne.s32.totalorder %s65, %s67
      %p71 = scmp.eq.s32.totalorder %s19, 0
      %p72 = por %p70, %p71
      %p73 = scmp.ne.s32.totalorder %s65, %s67
      %p74 = scmp.eq.s32.totalorder %s24, 3
      %p75 = por %p73, %p74
      %p76 = scmp.ne.s32.totalorder %s67, %s68
      %p77 = scmp.eq.s32.totalorder %s24, 0
      %p78 = por %p76, %p77
      %p79 = scmp.ne.s32.totalorder %s67, %s68
      %p80 = scmp.eq.s32.totalorder %s25, 3
      %p81 = por %p79, %p80
      %p83 = scmp.ne.s32.totalorder %s68, %s82
      %p84 = scmp.eq.s32.totalorder %s25, 0
      %p85 = por %p83, %p84
      %s87 = sadd.s32 %s86, 1
      %p90 = scmp.eq.s32.totalorder %s19, 3
      %p91 = scmp.ne.s32.totalorder %s86, %s88
      %p92 = scmp.eq.s32.totalorder %s19, 0
      %p93 = por %p91, %p92
      %p94 = scmp.ne.s32.totalorder %s86, %s88
      %p95 = scmp.eq.s32.totalorder %s24, 3
      %p96 = por %p94, %p95
      %p97 = scmp.ne.s32.totalorder %s88, %s89
      %p98 = scmp.eq.s32.totalorder %s24, 0
      %p99 = por %p97, %p98
      %p100 = scmp.ne.s32.totalorder %s88, %s89
      %p101 = scmp.eq.s32.totalorder %s25, 3
      %p102 = por %p100, %p101
      %p104 = scmp.ne.s32.totalorder %s89, %s103
      %p105 = scmp.eq.s32.totalorder %s25, 0
      %p106 = por %p104, %p105
      %s108 = sadd.s32 %s107, 1
      %p111 = scmp.eq.s32.totalorder %s19, 3
      %p112 = scmp.ne.s32.totalorder %s107, %s109
      %p113 = scmp.eq.s32.totalorder %s19, 0
      %p114 = por %p112, %p113
      %p115 = scmp.ne.s32.totalorder %s107, %s109
      %p116 = scmp.eq.s32.totalorder %s24, 3
      %p117 = por %p115, %p116
      %p118 = scmp.ne.s32.totalorder %s109, %s110
      %p119 = scmp.eq.s32.totalorder %s24, 0
      %p120 = por %p118, %p119
      %p121 = scmp.ne.s32.totalorder %s109, %s110
      %p122 = scmp.eq.s32.totalorder %s25, 3
      %p123 = por %p121, %p122
      %p125 = scmp.ne.s32.totalorder %s110, %s124
      %p126 = scmp.eq.s32.totalorder %s25, 0
      %p127 = por %p125, %p126
      %s129 = sadd.s32 %s128, 1
      %p132 = scmp.eq.s32.totalorder %s19, 3
      %p133 = scmp.ne.s32.totalorder %s128, %s130
      %p134 = scmp.eq.s32.totalorder %s19, 0
      %p135 = por %p133, %p134
      %p136 = scmp.ne.s32.totalorder %s128, %s130
      %p137 = scmp.eq.s32.totalorder %s24, 3
      %p138 = por %p136, %p137
      %p139 = scmp.ne.s32.totalorder %s130, %s131
      %p140 = scmp.eq.s32.totalorder %s24, 0
      %p141 = por %p139, %p140
      %p142 = scmp.ne.s32.totalorder %s130, %s131
      %p143 = scmp.eq.s32.totalorder %s25, 3
      %p144 = por %p142, %p143
      %p146 = scmp.ne.s32.totalorder %s131, %s145
      %p147 = scmp.eq.s32.totalorder %s25, 0
      %p148 = por %p146, %p147
      %s149 = ssub.s32 %s27, %s34
      %p150 = scmp.eq.s32.totalorder %s149, 0
      %s152 = sadd.s32 %s151, 1
      %s153 = scalar_select %p150, %s151, %s152
      %p156 = pneg %p150
      %p157 = scmp.eq.s32.totalorder %s19, 3
      %p158 = por %p156, %p157
      %p159 = scmp.ne.s32.totalorder %s151, %s154
      %p160 = scmp.eq.s32.totalorder %s19, 0
      %p161 = por %p159, %p160
      %p162 = scmp.ne.s32.totalorder %s151, %s154
      %p163 = scmp.eq.s32.totalorder %s24, 3
      %p164 = por %p162, %p163
      %p165 = scmp.ne.s32.totalorder %s154, %s155
      %p166 = scmp.eq.s32.totalorder %s24, 0
      %p167 = por %p165, %p166
      %p168 = scmp.ne.s32.totalorder %s154, %s155
      %p169 = scmp.eq.s32.totalorder %s25, 3
      %p170 = por %p168, %p169
      %p172 = scmp.ne.s32.totalorder %s155, %s171
      %p173 = scmp.eq.s32.totalorder %s25, 0
      %p174 = por %p172, %p173
      %s175 = ssub.s32 %s27, %s34
      %p176 = scmp.eq.s32.totalorder %s175, 0
      %s178 = sadd.s32 %s177, 1
      %s179 = scalar_select %p176, %s177, %s178
      %p182 = pneg %p176
      %p183 = scmp.eq.s32.totalorder %s19, 3
      %p184 = por %p182, %p183
      %p185 = scmp.ne.s32.totalorder %s177, %s180
      %p186 = scmp.eq.s32.totalorder %s19, 0
      %p187 = por %p185, %p186
      %p188 = scmp.ne.s32.totalorder %s177, %s180
      %p189 = scmp.eq.s32.totalorder %s24, 3
      %p190 = por %p188, %p189
      %p191 = scmp.ne.s32.totalorder %s180, %s181
      %p192 = scmp.eq.s32.totalorder %s24, 0
      %p193 = por %p191, %p192
      %p194 = scmp.ne.s32.totalorder %s180, %s181
      %p195 = scmp.eq.s32.totalorder %s25, 3
      %p196 = por %p194, %p195
      %p198 = scmp.ne.s32.totalorder %s181, %s197
      %p199 = scmp.eq.s32.totalorder %s25, 0
      %p200 = por %p198, %p199
      %s201 = ssub.s32 %s26, %s38
      %s202 = ssub.s32 %s27, %s34
      %s203 = sor.u32 %s201, %s202
      %p204 = scmp.eq.s32.totalorder %s203, 0
      %s206 = sadd.s32 %s205, 1
      %s207 = scalar_select %p204, %s205, %s206
      %p210 = pneg %p204
      %p211 = scmp.eq.s32.totalorder %s19, 3
      %p212 = por %p210, %p211
      %p213 = scmp.ne.s32.totalorder %s205, %s208
      %p214 = scmp.eq.s32.totalorder %s19, 0
      %p215 = por %p213, %p214
      %p216 = scmp.ne.s32.totalorder %s205, %s208
      %p217 = scmp.eq.s32.totalorder %s24, 3
      %p218 = por %p216, %p217
      %p219 = scmp.ne.s32.totalorder %s208, %s209
      %p220 = scmp.eq.s32.totalorder %s24, 0
      %p221 = por %p219, %p220
      %p222 = scmp.ne.s32.totalorder %s208, %s209
      %p223 = scmp.eq.s32.totalorder %s25, 3
      %p224 = por %p222, %p223
      %p226 = scmp.ne.s32.totalorder %s209, %s225
      %p227 = scmp.eq.s32.totalorder %s25, 0
      %p228 = por %p226, %p227
      %p229 = scmp.le.s32.totalorder 1, %s19
      %p230 = scmp.lt.s32.totalorder %s19, 5
      %p231 = pnand %p229, %p230
      %p232 = pneg %p231
      // Predicated region
      $region9: #{bert_mlm_forward.1} parent=5 // pred_check
        _
      $region10: #{bert_mlm_forward.1} parent=5 // pred_check_branch
        %234 = sbr.rel (%p231) target = $region12
      $region11: #{bert_mlm_forward.1} parent=5 // pred_region
        %s235 = ssub.s32 %s19, 1
        // Predicated region
        $region13: #{bert_mlm_forward.1} parent=11 // pred_check
          %p236 = pneg %p57
        $region14: #{bert_mlm_forward.1} parent=11 // pred_check_branch
          %238 = sbr.rel (%p236) target = $region16
        $region15: #{bert_mlm_forward.1} parent=11 // pred_region
          %s239 = smul.u32 2, %s28
          %p240 = scmp.lt.s32.totalorder %s239, 1
          %s241 = scalar_select %p240, %s239, 1
          %s242 = smul.addr %s241, 8
          %s243 = scalar_lea.vmem %s0, %s242
          %s244 = smul.u32 2, %s28
        $region16: #{bert_mlm_forward.1} parent=11 // pred_fallthru
          _
        // Predicated region
        $region17: #{bert_mlm_forward.1} parent=11 // pred_check
          %p245 = pneg %p78
        $region18: #{bert_mlm_forward.1} parent=11 // pred_check_branch
          %247 = sbr.rel (%p245) target = $region20
        $region19: #{bert_mlm_forward.1} parent=11 // pred_region
          _
        $region20: #{bert_mlm_forward.1} parent=11 // pred_fallthru
          _
        // Predicated region
        $region21: #{bert_mlm_forward.1} parent=11 // pred_check
          %p248 = pneg %p99
        $region22: #{bert_mlm_forward.1} parent=11 // pred_check_branch
          %250 = sbr.rel (%p248) target = $region24
        $region23: #{bert_mlm_forward.1} parent=11 // pred_region
          _
        $region24: #{bert_mlm_forward.1} parent=11 // pred_fallthru
          _
        // Predicated region
        $region25: #{bert_mlm_forward.1} parent=11 // pred_check
          %p251 = pneg %p120
        $region26: #{bert_mlm_forward.1} parent=11 // pred_check_branch
          %253 = sbr.rel (%p251) target = $region28
        $region27: #{bert_mlm_forward.1} parent=11 // pred_region
          _
        $region28: #{bert_mlm_forward.1} parent=11 // pred_fallthru
          _
        // Predicated region
        $region29: #{bert_mlm_forward.1} parent=11 // pred_check
          %p254 = pneg %p141
        $region30: #{bert_mlm_forward.1} parent=11 // pred_check_branch
          %256 = sbr.rel (%p254) target = $region32
        $region31: #{bert_mlm_forward.1} parent=11 // pred_region
          _
        $region32: #{bert_mlm_forward.1} parent=11 // pred_fallthru
          _
      $region12: #{bert_mlm_forward.1} parent=5 // pred_fallthru
        _
      %p257 = scmp.lt.s32.totalorder %s19, 4
      // Predicated region
      $region33: #{bert_mlm_forward.1} parent=5 // pred_check
        %p258 = pneg %p257
      $region34: #{bert_mlm_forward.1} parent=5 // pred_check_branch
        %260 = sbr.rel (%p258) target = $region36
      $region35: #{bert_mlm_forward.1} parent=5 // pred_region
        // Predicated region
        $region37: #{bert_mlm_forward.1} parent=35 // pred_check
          %p261 = pneg %p161
        $region38: #{bert_mlm_forward.1} parent=35 // pred_check_branch
          %263 = sbr.rel (%p261) target = $region40
        $region39: #{bert_mlm_forward.1} parent=35 // pred_region
          %s264 = sand.u32 %s151, 1
          %s265 = scalar_lea.sflag [#allocation4], %s264
          %s266 = sand.u32 %s151, 1
          %s267 = smul.addr %s266, 32
          %s268 = scalar_lea.vmem [#allocation3], %s267
          %s270 = ssub.s32 512, 512
          %271 = vsyncadd %s265, %s270
          %s272 = smul.addr %s27, 128
          %s273 = scalar_lea.hbm %s5, %s272
          %s274 = sshll.u32 %s268, 4
          %s275 = int_to_ptr.vmem [resolvable:$true] %s274
          %280 = dma.hbm_to_vmem [thread:$0]  %s273, 512, %s275, %s265, 512, 128, 8
        $region40: #{bert_mlm_forward.1} parent=35 // pred_fallthru
          _
        // Predicated region
        $region41: #{bert_mlm_forward.1} parent=35 // pred_check
          %p281 = pneg %p187
        $region42: #{bert_mlm_forward.1} parent=35 // pred_check_branch
          %283 = sbr.rel (%p281) target = $region44
        $region43: #{bert_mlm_forward.1} parent=35 // pred_region
          %p284 = scmp.lt.s32.totalorder %s27, 3
          %s285 = scalar_select %p284, %s27, 3
          %s286 = scalar_lea.vmem %s6, %s285
        $region44: #{bert_mlm_forward.1} parent=35 // pred_fallthru
          _
      $region36: #{bert_mlm_forward.1} parent=5 // pred_fallthru
        _
      %p287 = scmp.le.s32.totalorder 1, %s19
      %p288 = scmp.lt.s32.totalorder %s19, 5
      %p289 = pnand %p287, %p288
      %p290 = pneg %p289
      // Predicated region
      $region45: #{bert_mlm_forward.1} parent=5 // pred_check
        _
      $region46: #{bert_mlm_forward.1} parent=5 // pred_check_branch
        %292 = sbr.rel (%p289) target = $region48
      $region47: #{bert_mlm_forward.1} parent=5 // pred_region
        %s293 = ssub.s32 %s19, 1
        %s294 = sand.u32 %s154, 1
        %s295 = scalar_lea.sflag [#allocation4], %s294
        %s296 = sand.u32 %s154, 1
        %s297 = smul.addr %s296, 32
        %s298 = scalar_lea.vmem [#allocation3], %s297
        // Predicated region
        $region49: #{bert_mlm_forward.1} parent=47 // pred_check
          %p299 = pneg %p167
        $region50: #{bert_mlm_forward.1} parent=47 // pred_check_branch
          %301 = sbr.rel (%p299) target = $region52
        $region51: #{bert_mlm_forward.1} parent=47 // pred_region
          %302 = dma.done %s295, 512
        $region52: #{bert_mlm_forward.1} parent=47 // pred_fallthru
          _
        %s303 = smul.u32 2, %s28
        %p304 = scmp.lt.s32.totalorder %s303, 1
        %s305 = scalar_select %p304, %s303, 1
        %s306 = smul.addr %s305, 8
        %s307 = scalar_lea.vmem %s0, %s306
        %p308 = pneg %p57
        %p309 = pneg %p54
        %p310 = pneg %p78
        %p311 = pneg %p75
        %p312 = pneg %p99
        %p313 = pneg %p96
        %p314 = pneg %p120
        %p315 = pneg %p117
        %p316 = pneg %p141
        %p317 = pneg %p138
        %s318 = sand.u32 %s154, 1
        %s319 = scalar_lea.sflag [#allocation4], %s318
        %s320 = sand.u32 %s154, 1
        %s321 = smul.addr %s320, 32
        %s322 = scalar_lea.vmem [#allocation3], %s321
        %p323 = pneg %p167
        %p324 = pneg %p164
        %p325 = scmp.lt.s32.totalorder %s29, 3
        %s326 = scalar_select %p325, %s29, 3
        %s327 = scalar_lea.vmem %s6, %s326
        %p328 = pneg %p193
        %p329 = pneg %p190
        %p330 = pneg %p221
        %p331 = pneg %p218
        %s332 = sand.u32 %s208, 1
        %s333 = scalar_lea.sflag [#allocation5], %s332
        %s334 = sand.u32 %s208, 1
        %s335 = smul.addr %s334, 16
        %s336 = scalar_lea.vmem [#allocation6], %s335
        %s337 = smul.u32 2, %s28
        %p338 = scmp.lt.s32.totalorder %s337, 1
        %s339 = scalar_select %p338, %s337, 1
        %s340 = smul.addr %s339, 8
        %s341 = scalar_lea.vmem %s0, %s340
        %s342 = smul.u32 2, %s28
        %p343 = scmp.lt.s32.totalorder %s29, 3
        %s344 = scalar_select %p343, %s29, 3
        %s345 = scalar_lea.vmem %s6, %s344
        %s346 = smul.u32 2, %s28
        %p347 = scmp.eq.s32.totalorder %s29, 0
        // Predicated region
        $region53: #{bert_mlm_forward.1} parent=47 // pred_check
          %p348 = pneg %p347
        $region54: #{bert_mlm_forward.1} parent=47 // pred_check_branch
          %350 = sbr.rel (%p348) target = $region56
        $region55: #{bert_mlm_forward.1} parent=47 // pred_region
          %v351 = vld [vmem:[%s341] sm:$0xff]
          %v352 = vld [vmem:[%s341 + $0x8] sm:$0xff]
          %v353 = vld [vmem:[%s1] sm:$0xff]
          %v354 = vld [vmem:[%s1 + $0x8] sm:$0xff]
          %v355 = vld [vmem:[%s1 + $0x10] sm:$0xff]
          %v356 = vld [vmem:[%s1 + $0x18] sm:$0xff]
          %v357 = vld [vmem:[%s2] sm:$0x1]
          %v359 = vlaneseq
          %v360 = vshrl.u32 %v359, 7
          %v361 = vsub.s32 0, %v360
          %v362 = vrot.slane %v357, %v361
          %vm364 = vcmask 261120
          %v366 = vsel %vm364, %v351, 0
          %v369 = vsel %vm364, %v352, 0
          %371 = vmatprep.subr.mxu0 0.0
          %372 = vmatpush1.msra.mxu0 %v353
          %373 = vmatprep.subr.mxu0 0.0
          %374 = vmatpush1.msra.mxu0 %v354
          %375 = vmatprep.subr.mxu0 0.0
          %376 = vmatpush1.msra.mxu0 %v355
          %377 = vmatprep.subr.mxu0 0.0
          %378 = vmatpush1.msra.mxu0 %v356
          %379 = vmatprep.subr.mxu0 0.0
          %380 = vmatpush1.msra.mxu0 0.0
          %381 = vmatprep.subr.mxu0 0.0
          %382 = vmatpush1.msra.mxu0 0.0
          %383 = vmatprep.subr.mxu0 0.0
          %384 = vmatpush1.msra.mxu0 0.0
          %385 = vmatprep.subr.mxu0 0.0
          %386 = vmatpush1.msra.mxu0 0.0
          %387 = vmatprep.subr.mxu0 0.0
          %388 = vmatpush1.msra.mxu0 0.0
          %389 = vmatprep.subr.mxu0 0.0
          %390 = vmatpush1.msra.mxu0 0.0
          %391 = vmatprep.subr.mxu0 0.0
          %392 = vmatpush1.msra.mxu0 0.0
          %393 = vmatprep.subr.mxu0 0.0
          %394 = vmatpush1.msra.mxu0 0.0
          %395 = vmatprep.subr.mxu0 0.0
          %396 = vmatpush1.msra.mxu0 0.0
          %397 = vmatprep.subr.mxu0 0.0
          %398 = vmatpush1.msra.mxu0 0.0
          %399 = vmatprep.subr.mxu0 0.0
          %400 = vmatpush1.msra.mxu0 0.0
          %401 = vmatprep.subr.mxu0 0.0
          %402 = vmatpush1.msra.mxu0 0.0
          %403 = vmatprep.subr.mxu0 0.0
          %404 = vmatpush1.msra.mxu0 0.0
          %405 = vmatprep.subr.mxu0 0.0
          %406 = vmatpush1.msra.mxu0 0.0
          %407 = vmatprep.subr.mxu0 0.0
          %408 = vmatpush1.msra.mxu0 0.0
          %409 = vmatprep.subr.mxu0 0.0
          %410 = vmatpush1.msra.mxu0 0.0
          %411 = vmatprep.subr.mxu0 0.0
          %412 = vmatpush1.msra.mxu0 0.0
          %413 = vmatprep.subr.mxu0 0.0
          %414 = vmatpush1.msra.mxu0 0.0
          %415 = vmatprep.subr.mxu0 0.0
          %416 = vmatpush1.msra.mxu0 0.0
          %417 = vmatprep.subr.mxu0 0.0
          %418 = vmatpush1.msra.mxu0 0.0
          %419 = vmatprep.subr.mxu0 0.0
          %420 = vmatpush1.msra.mxu0 0.0
          %421 = vmatprep.subr.mxu0 0.0
          %422 = vmatpush1.msra.mxu0 0.0
          %423 = vmatprep.subr.mxu0 0.0
          %424 = vmatpush1.msra.mxu0 0.0
          %425 = vmatprep.subr.mxu0 0.0
          %426 = vmatpush1.msra.mxu0 0.0
          %427 = vmatprep.subr.mxu0 0.0
          %428 = vmatpush1.msra.mxu0 0.0
          %429 = vmatprep.subr.mxu0 0.0
          %430 = vmatpush1.msra.mxu0 0.0
          %431 = vmatprep.subr.mxu0 0.0
          %432 = vmatpush1.msra.mxu0 0.0
          %433 = vmatprep.subr.mxu0 0.0
          %434 = vmatpush1.msra.mxu0 0.0
          %435 = vmatprep.mubr.f32.mxu0 0.0
          %436 = vmatmul.mubr.f32.gmra.mrb[0].mxu0 %v366
          %v437 = vpop.f32.mrb[0].mxu0
          %v438 = vadd.f32 %v362, %v437
          %v439 = vpop.f32.mrb[0].mxu0
          %440 = vmatprep.mubr.f32.mxu0 0.0
          %441 = vmatmul.mubr.f32.gmra.mrb[0].mxu0 %v369
          %v442 = vpop.f32.mrb[0].mxu0
          %v443 = vadd.f32 %v362, %v442
          %v444 = vpop.f32.mrb[0].mxu0
          %445 = vdwg.mxu0
          %v446 = vmul.f32 %v438, 0.5
          %v447 = vmul.f32 %v443, 0.5
          %v448 = vmul.f32 %v438, 0.044715
          %v449 = vmul.f32 %v443, 0.044715
          %v450 = vmul.f32 %v448, %v438
          %v451 = vmul.f32 %v449, %v443
          %v452 = vmul.f32 %v450, %v438
          %v453 = vmul.f32 %v451, %v443
          %v454 = vadd.f32 %v438, %v452
          %v455 = vadd.f32 %v443, %v453
          %v456 = vmul.f32 %v454, 0.7978846
          %v457 = vmul.f32 %v455, 0.7978846
          %v458 = vtanh.pop %v456
          %v459 = vtanh.pop %v457
          %v460 = vadd.f32 %v458, 1.0
          %v461 = vadd.f32 %v459, 1.0
          %v462 = vmul.f32 %v446, %v460
          %v463 = vmul.f32 %v447, %v461
          %v464 = vsel %vm364, %v462, 0.0
          %465 = vadd.xlane.f32.xlu0 %v464
          %v466 = vpop.xlane.xlu0 %465
          %v467 = vsel %vm364, %v463, 0.0
          %468 = vadd.xlane.f32.xlu0 %v467
          %v469 = vpop.xlane.xlu0 %468
          %v470 = vrcp.pop 32.0
          %v471 = vmul.f32 %v466, %v470
          %v472 = vmul.f32 %v469, %v470
          %v473 = vsub.f32 %v462, %v471
          %v474 = vsub.f32 %v463, %v472
          %v475 = vmul.f32 %v473, %v473
          %v476 = vmul.f32 %v474, %v474
          %v477 = vsel %vm364, %v475, 0.0
          %478 = vadd.xlane.f32.xlu0 %v477
          %v479 = vpop.xlane.xlu0 %478
          %v480 = vsel %vm364, %v476, 0.0
          %481 = vadd.xlane.f32.xlu0 %v480
          %v482 = vpop.xlane.xlu0 %481
          %v483 = vmul.f32 %v479, %v470
          %v484 = vmul.f32 %v482, %v470
          %v485 = vadd.f32 %v483, 1e-12
          %v486 = vadd.f32 %v484, 1e-12
          %v487 = vrsqrt.pop %v485
          %v488 = vrsqrt.pop %v486
          %v489 = vmul.f32 %v473, %v487
          %v490 = vmul.f32 %v474, %v488
          %v491 = vld [vmem:[%s3] sm:$0x1]
          %v493 = vlaneseq
          %v494 = vshrl.u32 %v493, 7
          %v495 = vsub.s32 0, %v494
          %v496 = vrot.slane %v491, %v495
          %v498 = vmul.f32 %v489, %v496
          %v499 = vmul.f32 %v490, %v496
          %v500 = vld [vmem:[%s4] sm:$0x1]
          %v502 = vlaneseq
          %v503 = vshrl.u32 %v502, 7
          %v504 = vsub.s32 0, %v503
          %v505 = vrot.slane %v500, %v504
          %v507 = vadd.f32 %v498, %v505
          %v508 = vadd.f32 %v499, %v505
          %509 = vst.msk [vmem:[#allocation2] sm:$0xff] %vm364, %v507
          %510 = vst.msk [vmem:[#allocation2 + $0x8] sm:$0xff] %vm364, %v508
        $region56: #{bert_mlm_forward.1} parent=47 // pred_fallthru
          _
        %v511 = vld [vmem:[#allocation2] sm:$0xff]
        %v512 = vld [vmem:[#allocation2 + $0x8] sm:$0xff]
        %v513 = vld [vmem:[%s298] sm:$0xff]
        %v514 = vld [vmem:[%s298 + $0x8] sm:$0xff]
        %v515 = vld [vmem:[%s298 + $0x10] sm:$0xff]
        %v516 = vld [vmem:[%s298 + $0x18] sm:$0xff]
        %v517 = vld [vmem:[%s345] sm:$0x1]
        %v519 = vlaneseq
        %v520 = vshrl.u32 %v519, 7
        %v521 = vsub.s32 0, %v520
        %v522 = vrot.slane %v517, %v521
        %vm524 = vcmask 261120
        %v526 = vsel %vm524, %v511, 0
        %v529 = vsel %vm524, %v512, 0
        %531 = vmatprep.subr.mxu0 0.0
        %532 = vmatpush1.msra.mxu0 %v513
        %533 = vmatprep.subr.mxu0 0.0
        %534 = vmatpush1.msra.mxu0 %v514
        %535 = vmatprep.subr.mxu0 0.0
        %536 = vmatpush1.msra.mxu0 %v515
        %537 = vmatprep.subr.mxu0 0.0
        %538 = vmatpush1.msra.mxu0 %v516
        %539 = vmatprep.subr.mxu0 0.0
        %540 = vmatpush1.msra.mxu0 0.0
        %541 = vmatprep.subr.mxu0 0.0
        %542 = vmatpush1.msra.mxu0 0.0
        %543 = vmatprep.subr.mxu0 0.0
        %544 = vmatpush1.msra.mxu0 0.0
        %545 = vmatprep.subr.mxu0 0.0
        %546 = vmatpush1.msra.mxu0 0.0
        %547 = vmatprep.subr.mxu0 0.0
        %548 = vmatpush1.msra.mxu0 0.0
        %549 = vmatprep.subr.mxu0 0.0
        %550 = vmatpush1.msra.mxu0 0.0
        %551 = vmatprep.subr.mxu0 0.0
        %552 = vmatpush1.msra.mxu0 0.0
        %553 = vmatprep.subr.mxu0 0.0
        %554 = vmatpush1.msra.mxu0 0.0
        %555 = vmatprep.subr.mxu0 0.0
        %556 = vmatpush1.msra.mxu0 0.0
        %557 = vmatprep.subr.mxu0 0.0
        %558 = vmatpush1.msra.mxu0 0.0
        %559 = vmatprep.subr.mxu0 0.0
        %560 = vmatpush1.msra.mxu0 0.0
        %561 = vmatprep.subr.mxu0 0.0
        %562 = vmatpush1.msra.mxu0 0.0
        %563 = vmatprep.subr.mxu0 0.0
        %564 = vmatpush1.msra.mxu0 0.0
        %565 = vmatprep.subr.mxu0 0.0
        %566 = vmatpush1.msra.mxu0 0.0
        %567 = vmatprep.subr.mxu0 0.0
        %568 = vmatpush1.msra.mxu0 0.0
        %569 = vmatprep.subr.mxu0 0.0
        %570 = vmatpush1.msra.mxu0 0.0
        %571 = vmatprep.subr.mxu0 0.0
        %572 = vmatpush1.msra.mxu0 0.0
        %573 = vmatprep.subr.mxu0 0.0
        %574 = vmatpush1.msra.mxu0 0.0
        %575 = vmatprep.subr.mxu0 0.0
        %576 = vmatpush1.msra.mxu0 0.0
        %577 = vmatprep.subr.mxu0 0.0
        %578 = vmatpush1.msra.mxu0 0.0
        %579 = vmatprep.subr.mxu0 0.0
        %580 = vmatpush1.msra.mxu0 0.0
        %581 = vmatprep.subr.mxu0 0.0
        %582 = vmatpush1.msra.mxu0 0.0
        %583 = vmatprep.subr.mxu0 0.0
        %584 = vmatpush1.msra.mxu0 0.0
        %585 = vmatprep.subr.mxu0 0.0
        %586 = vmatpush1.msra.mxu0 0.0
        %587 = vmatprep.subr.mxu0 0.0
        %588 = vmatpush1.msra.mxu0 0.0
        %589 = vmatprep.subr.mxu0 0.0
        %590 = vmatpush1.msra.mxu0 0.0
        %591 = vmatprep.subr.mxu0 0.0
        %592 = vmatpush1.msra.mxu0 0.0
        %593 = vmatprep.subr.mxu0 0.0
        %594 = vmatpush1.msra.mxu0 0.0
        %595 = vmatprep.mubr.f32.mxu0 0.0
        %596 = vmatmul.mubr.f32.gmra.mrb[0].mxu0 %v526
        %v597 = vpop.f32.mrb[0].mxu0
        %v598 = vadd.f32 %v522, %v597
        %v599 = vpop.f32.mrb[0].mxu0
        %600 = vmatprep.mubr.f32.mxu0 0.0
        %601 = vmatmul.mubr.f32.gmra.mrb[0].mxu0 %v529
        %v602 = vpop.f32.mrb[0].mxu0
        %v603 = vadd.f32 %v522, %v602
        %v604 = vpop.f32.mrb[0].mxu0
        %605 = vdwg.mxu0
        %606 = vst [vmem:[%s336] sm:$0xff] %v598
        %607 = vst [vmem:[%s336 + $0x8] sm:$0xff] %v603
        %s608 = sand.u32 %s208, 1
        %s609 = scalar_lea.sflag [#allocation5], %s608
        %s610 = sand.u32 %s208, 1
        %s611 = smul.addr %s610, 16
        %s612 = scalar_lea.vmem [#allocation6], %s611
        // Predicated region
        $region57: #{bert_mlm_forward.1} parent=47 // pred_check
          %p613 = pneg %p218
        $region58: #{bert_mlm_forward.1} parent=47 // pred_check_branch
          %615 = sbr.rel (%p613) target = $region60
        $region59: #{bert_mlm_forward.1} parent=47 // pred_region
          %s616 = smul.u32 2, %s28
          %s618 = ssub.s32 256, 256
          %619 = vsyncadd %s609, %s618
          %s620 = smul.addr %s616, 4
          %s621 = sadd.s32 %s29, %s620
          %s622 = smul.addr %s621, 128
          %s623 = scalar_lea.hbm %s7, %s622
          %s624 = sshll.u32 %s612, 4
          %s625 = int_to_ptr.vmem [resolvable:$true] %s624
          %630 = dma.vmem_to_hbm [thread:$0]  %s625, 256, %s623, %s609, 128, 512, 8
        $region60: #{bert_mlm_forward.1} parent=47 // pred_fallthru
          _
      $region48: #{bert_mlm_forward.1} parent=5 // pred_fallthru
        _
      %p631 = scmp.le.s32.totalorder 2, %s19
      // Predicated region
      $region61: #{bert_mlm_forward.1} parent=5 // pred_check
        %p632 = pneg %p631
      $region62: #{bert_mlm_forward.1} parent=5 // pred_check_branch
        %634 = sbr.rel (%p632) target = $region64
      $region63: #{bert_mlm_forward.1} parent=5 // pred_region
        %s635 = ssub.s32 %s19, 2
        // Predicated region
        $region65: #{bert_mlm_forward.1} parent=63 // pred_check
          %p636 = pneg %p224
        $region66: #{bert_mlm_forward.1} parent=63 // pred_check_branch
          %638 = sbr.rel (%p636) target = $region68
        $region67: #{bert_mlm_forward.1} parent=63 // pred_region
          %s639 = sand.u32 %s209, 1
          %s640 = scalar_lea.sflag [#allocation5], %s639
          %s641 = sand.u32 %s209, 1
          %s642 = smul.addr %s641, 16
          %s643 = scalar_lea.vmem [#allocation6], %s642
          %644 = dma.done %s640, 256
        $region68: #{bert_mlm_forward.1} parent=63 // pred_fallthru
          _
      $region64: #{bert_mlm_forward.1} parent=5 // pred_fallthru
        _
    $region6: #{bert_mlm_forward.1} parent=1 // loop_footer
      %s23 = sadd.s32 1, %s19
    $region7: #{bert_mlm_forward.1} parent=1 // loop_footer_branch
      %18 = sbr.rel target = $region3
    $region8: #{bert_mlm_forward.1} parent=1 // loop_exit
      _
    %645 = vsyncpa [#allocation4], 1
    %s646 = scalar_lea.sflag [#allocation4], 1
    %647 = vsyncpa %s646, 1
    %648 = vsyncpa [#allocation5], 1
    %s649 = scalar_lea.sflag [#allocation5], 1
    %650 = vsyncpa %s649, 1

</llo_original>
